<compile_context>
chip_gen: v7x
topology: tpu7x:2x2x1
jax: 0.10.0
libtpu: 0.0.40
codegen_flags: <defaults>
</compile_context>

<pallas_src>
import functools

import jax
import jax.numpy as jnp
from jax import lax
from jax.experimental import pallas as pl
from jax.experimental.pallas import tpu as pltpu


_INTERIOR_FORI_THRESHOLD = 8  # statically unroll up to this many interior strips


def _moving_avg_kernel(x_ref, o_ref, *, kernel_size, stride, pad, l, l_out, strip):
    """One (batch, channel-tile) block.

    x_ref: (L, Cb)      input tile  (time on sublanes, channels on lanes)
    o_ref: (L_out, Cb)  output tile
    """
    c = x_ref.shape[-1]
    inv_k = jnp.float32(1.0 / kernel_size)

    # Replicated edge rows (read once, kept in vregs as f32).
    first = None
    last = None
    if pad > 0:
        first = x_ref[0:1, :].astype(jnp.float32)      # used for padded rows <  pad
        last = x_ref[l - 1:l, :].astype(jnp.float32)   # used for padded rows >= pad + l

    n_strips = -(-l_out // strip)

    def emit_general_strip(t0, s):
        # t0, s are Python ints -> fully static slicing / clamp accounting.
        acc = jnp.zeros((s, c), dtype=jnp.float32)
        for k in range(kernel_size):
            # Padded-row index of output row (t0 + i) for window term k is
            # p_i = (t0 + i) * stride + k ; source row = clamp(p_i - pad, 0, l-1).
            n_front = 0
            n_back = 0
            for i in range(s):
                p = (t0 + i) * stride + k
                if p < pad:
                    n_front += 1
                elif p > pad + l - 1:
                    n_back += 1
            mid = s - n_front - n_back
            pieces = []
            if n_front > 0:
                pieces.append(jnp.broadcast_to(first, (n_front, c)))
            if mid > 0:
                a = (t0 + n_front) * stride + k - pad
                if stride == 1:
                    pieces.append(x_ref[a:a + mid, :].astype(jnp.float32))
                else:
                    # TODO(synk): strided sublane reads may lower to partial
                    # loads; restructure (stride-1 sum + row subsample) if a
                    # stride > 1 configuration ever becomes a hot path.
                    pieces.append(
                        x_ref[pl.ds(a, mid, stride=stride), :].astype(jnp.float32))
            if n_back > 0:
                pieces.append(jnp.broadcast_to(last, (n_back, c)))
            term = pieces[0] if len(pieces) == 1 else jnp.concatenate(pieces, axis=0)
            acc = acc + term
        o_ref[t0:t0 + s, :] = (acc * inv_k).astype(o_ref.dtype)

    def strip_is_interior(si):
        t0 = si * strip
        if t0 + strip > l_out:            # partial (last) strip
            return False
        p_min = t0 * stride
        p_max = (t0 + strip - 1) * stride + kernel_size - 1
        return (p_min >= pad) and (p_max <= pad + l - 1)

    # Interior strips form one contiguous run [si_lo, si_hi).
    si_lo = n_strips
    for si in range(n_strips):
        if strip_is_interior(si):
            si_lo = si
            break
    si_hi = si_lo
    for si in range(si_lo, n_strips):
        if strip_is_interior(si):
            si_hi = si + 1
        else:
            break

    # Leading (front-pad) strips: static, with per-term clamping.
    for si in range(0, si_lo):
        t0 = si * strip
        emit_general_strip(t0, min(strip, l_out - t0))

    # Interior strips: every window term is a plain in-bounds slice of x_ref.
    n_interior = si_hi - si_lo
    if 0 < n_interior <= _INTERIOR_FORI_THRESHOLD:
        for si in range(si_lo, si_hi):
            emit_general_strip(si * strip, strip)
    elif n_interior > _INTERIOR_FORI_THRESHOLD:
        def interior_body(si, carry):
            t0 = pl.multiple_of(si * strip, strip)
            acc = jnp.zeros((strip, c), dtype=jnp.float32)
            for k in range(kernel_size):
                a = t0 * stride + (k - pad)
                if stride == 1:
                    term = x_ref[pl.ds(a, strip), :]
                else:
                    term = x_ref[pl.ds(a, strip, stride=stride), :]
                acc = acc + term.astype(jnp.float32)
            o_ref[pl.ds(t0, strip), :] = (acc * inv_k).astype(o_ref.dtype)
            return carry

        lax.fori_loop(si_lo, si_hi, interior_body, 0)

    # Trailing (back-pad and/or partial) strips: static, with clamping.
    for si in range(si_hi, n_strips):
        t0 = si * strip
        emit_general_strip(t0, min(strip, l_out - t0))


def moving_avg(x, kernel_size, stride=1):
    """Replicate-pad + AvgPool1d over the time axis. x: (B, L, C) -> (B, L_out, C)."""
    assert x.ndim == 3
    assert kernel_size >= 1 and stride >= 1
    B, L, C = x.shape
    pad = (kernel_size - 1) // 2
    L_pad = L + 2 * pad
    L_out = (L_pad - kernel_size) // stride + 1
    assert L_out >= 1, "moving_avg: empty output"

    itemsize = jnp.dtype(x.dtype).itemsize

    # ---- Channel (lane) tiling: only when C is a clean multiple of 128. ----
    # Target <= ~6 MiB per input block so 2x double-buffered input + 2x output
    # blocks stay well under v7x's 64 MiB VMEM (and comfortably inside v5e/v6e).
    in_budget = 6 * 1024 * 1024
    c_blk = C
    if C % 128 == 0:
        m = C // 128
        cap = max(1, min(m, in_budget // max(1, L * 128 * itemsize)))
        d = 1
        for cand in range(cap, 0, -1):
            if m % cand == 0:
                d = cand
                break
        c_blk = d * 128
        # Megacore (v7x): keep >= 2 grid blocks when B == 1 and C allows it.
        if B == 1 and c_blk == C and m % 2 == 0:
            c_blk = C // 2
    # TODO(synk): time-tiled (halo) path for very long L where even a 128-lane
    #             block (L * 128 * itemsize) no longer fits in VMEM.
    n_c = C // c_blk

    # ---- Strip size for the in-kernel f32 accumulator (kept in vregs). ----
    lanes_eff = max(128, ((c_blk + 127) // 128) * 128)
    strip = max(8, ((32 * 1024 // (lanes_eff * 4)) // 8) * 8)
    strip = min(64, strip)

    # ---- VMEM limit: 2x double-buffered in + 2x out blocks + headroom. ----
    needed = 2 * L * c_blk * itemsize + 2 * L_out * c_blk * itemsize + (1 << 20)
    vmem_limit = int(max(32 * 1024 * 1024, min(needed * 3 // 2, 100 * 1024 * 1024)))

    kern = functools.partial(
        _moving_avg_kernel,
        kernel_size=kernel_size,
        stride=stride,
        pad=pad,
        l=L,
        l_out=L_out,
        strip=strip,
    )

    return pl.pallas_call(
        kern,
        out_shape=jax.ShapeDtypeStruct((B, L_out, C), x.dtype),
        grid_spec=pltpu.PrefetchScalarGridSpec(
            num_scalar_prefetch=0,
            grid=(B, n_c),
            in_specs=[pl.BlockSpec((None, L, c_blk), lambda b, j: (b, 0, j))],
            out_specs=pl.BlockSpec((None, L_out, c_blk), lambda b, j: (b, 0, j)),
        ),
        compiler_params=pltpu.CompilerParams(
            dimension_semantics=("parallel", "parallel"),
            vmem_limit_bytes=vmem_limit,
        ),
    )(x)


def _reference_moving_avg(x, kernel_size, stride):
    # Pure-JAX reference mirroring the PyTorch forward (replicate pad + AvgPool1d).
    pad = (kernel_size - 1) // 2
    front = jnp.repeat(x[:, :1, :], pad, axis=1)
    end = jnp.repeat(x[:, -1:, :], pad, axis=1)
    xp = jnp.concatenate([front, x, end], axis=1)
    cs = jnp.cumsum(xp.astype(jnp.float32), axis=1)
    cs = jnp.concatenate([jnp.zeros_like(cs[:, :1, :]), cs], axis=1)
    L_out = (xp.shape[1] - kernel_size) // stride + 1
    starts = jnp.arange(L_out) * stride
    win = (cs[:, starts + kernel_size, :] - cs[:, starts, :]) / kernel_size
    return win.astype(x.dtype)


if __name__ == "__main__":
    key = jax.random.PRNGKey(0)
    k1, k2 = jax.random.split(key)

    # Small shape consistent with the module usage: (batch, time, channel).
    B, L, C = 2, 16, 8
    kernel_size, stride = 5, 1  # moving_avg(kernel_size=5, stride=1)
    x = jax.random.normal(k1, (B, L, C), dtype=jnp.float32)
    out = jax.block_until_ready(moving_avg(x, kernel_size, stride))
    ref = _reference_moving_avg(x, kernel_size, stride)
    assert out.shape == ref.shape, (out.shape, ref.shape)
    assert jnp.allclose(out, ref, atol=1e-5, rtol=1e-5), "small-case mismatch"

    # Medium shape: exercises the lane-dense channel tile (C = 128) and the
    # fori_loop interior-strip path.
    B2, L2, C2 = 2, 1024, 128
    K2, s2 = 25, 1
    x2 = jax.random.normal(k2, (B2, L2, C2), dtype=jnp.float32)
    out2 = jax.block_until_ready(moving_avg(x2, K2, s2))
    ref2 = _reference_moving_avg(x2, K2, s2)
    assert out2.shape == ref2.shape, (out2.shape, ref2.shape)
    assert jnp.allclose(out2, ref2, atol=1e-4, rtol=1e-4), "medium-case mismatch"

    print("KERNEL_OK")
</pallas_src>

<mosaic_0001>
module attributes {stable_mosaic.version = 11 : i64} {
  func.func @_moving_avg_kernel(%arg0: i32, %arg1: i32, %arg2: memref<1x16x8xf32, #tpu.memory_space<vmem>>, %arg3: memref<1x16x8xf32, #tpu.memory_space<vmem>>) attributes {dimension_semantics = [#tpu.dimension_semantics<parallel>, #tpu.dimension_semantics<parallel>], iteration_bounds = array<i64: 2, 1>, scalar_prefetch = 0 : i64, scratch_operands = 0 : i64, tpu.core_type = #tpu.core_type<tc>, window_params = [{transform_indices = @transform_0, window_bounds = array<i64: 1, 16, 8>}, {transform_indices = @transform_1, window_bounds = array<i64: 1, 16, 8>}]} {
    %c0 = arith.constant 0 : index
    %c0_0 = arith.constant 0 : index
    %c0_1 = arith.constant 0 : index
    %0 = vector.load %arg2[%c0, %c0_0, %c0_1] : memref<1x16x8xf32, #tpu.memory_space<vmem>>, vector<1x1x8xf32>
    %1 = vector.shape_cast %0 : vector<1x1x8xf32> to vector<1x8xf32>
    %c0_2 = arith.constant 0 : index
    %c15 = arith.constant 15 : index
    %c0_3 = arith.constant 0 : index
    %2 = vector.load %arg2[%c0_2, %c15, %c0_3] : memref<1x16x8xf32, #tpu.memory_space<vmem>>, vector<1x1x8xf32>
    %3 = vector.shape_cast %2 : vector<1x1x8xf32> to vector<1x8xf32>
    %cst = arith.constant 0.000000e+00 : f32
    %4 = vector.broadcast %cst : f32 to vector<16x8xf32>
    %5 = vector.shape_cast %1 : vector<1x8xf32> to vector<1x8xf32>
    %6 = vector.broadcast %5 : vector<1x8xf32> to vector<2x8xf32>
    %c0_4 = arith.constant 0 : index
    %c0_5 = arith.constant 0 : index
    %c0_6 = arith.constant 0 : index
    %7 = vector.load %arg2[%c0_4, %c0_5, %c0_6] : memref<1x16x8xf32, #tpu.memory_space<vmem>>, vector<1x14x8xf32>
    %8 = vector.shape_cast %7 : vector<1x14x8xf32> to vector<14x8xf32>
    %9 = tpu.concatenate %6, %8 in 0 : vector<2x8xf32>, vector<14x8xf32> -> vector<16x8xf32>
    %10 = arith.addf %4, %9 : vector<16x8xf32>
    %c0_7 = arith.constant 0 : index
    %c0_8 = arith.constant 0 : index
    %c0_9 = arith.constant 0 : index
    %11 = vector.load %arg2[%c0_7, %c0_8, %c0_9] : memref<1x16x8xf32, #tpu.memory_space<vmem>>, vector<1x15x8xf32>
    %12 = vector.shape_cast %11 : vector<1x15x8xf32> to vector<15x8xf32>
    %13 = tpu.concatenate %1, %12 in 0 : vector<1x8xf32>, vector<15x8xf32> -> vector<16x8xf32>
    %14 = arith.addf %10, %13 : vector<16x8xf32>
    %c0_10 = arith.constant 0 : index
    %c0_11 = arith.constant 0 : index
    %c0_12 = arith.constant 0 : index
    %15 = vector.load %arg2[%c0_10, %c0_11, %c0_12] : memref<1x16x8xf32, #tpu.memory_space<vmem>>, vector<1x16x8xf32>
    %16 = vector.shape_cast %15 : vector<1x16x8xf32> to vector<16x8xf32>
    %17 = arith.addf %14, %16 : vector<16x8xf32>
    %c0_13 = arith.constant 0 : index
    %c1 = arith.constant 1 : index
    %c0_14 = arith.constant 0 : index
    %18 = vector.load %arg2[%c0_13, %c1, %c0_14] : memref<1x16x8xf32, #tpu.memory_space<vmem>>, vector<1x15x8xf32>
    %19 = vector.shape_cast %18 : vector<1x15x8xf32> to vector<15x8xf32>
    %20 = tpu.concatenate %19, %3 in 0 : vector<15x8xf32>, vector<1x8xf32> -> vector<16x8xf32>
    %21 = arith.addf %17, %20 : vector<16x8xf32>
    %c0_15 = arith.constant 0 : index
    %c2 = arith.constant 2 : index
    %c0_16 = arith.constant 0 : index
    %22 = vector.load %arg2[%c0_15, %c2, %c0_16] : memref<1x16x8xf32, #tpu.memory_space<vmem>>, vector<1x14x8xf32>
    %23 = vector.shape_cast %22 : vector<1x14x8xf32> to vector<14x8xf32>
    %24 = vector.shape_cast %3 : vector<1x8xf32> to vector<1x8xf32>
    %25 = vector.broadcast %24 : vector<1x8xf32> to vector<2x8xf32>
    %26 = tpu.concatenate %23, %25 in 0 : vector<14x8xf32>, vector<2x8xf32> -> vector<16x8xf32>
    %27 = arith.addf %21, %26 : vector<16x8xf32>
    %cst_17 = arith.constant 2.000000e-01 : f32
    %28 = vector.broadcast %cst_17 : f32 to vector<16x8xf32>
    %29 = arith.mulf %27, %28 : vector<16x8xf32>
    %c0_18 = arith.constant 0 : index
    %c0_19 = arith.constant 0 : index
    %c0_20 = arith.constant 0 : index
    %30 = vector.load %arg3[%c0_18, %c0_19, %c0_20] : memref<1x16x8xf32, #tpu.memory_space<vmem>>, vector<1x16x8xf32>
    %31 = vector.shape_cast %30 : vector<1x16x8xf32> to vector<16x8xf32>
    %32 = vector.shape_cast %29 : vector<16x8xf32> to vector<1x16x8xf32>
    tpu.vector_store %arg3[%c0_18, %c0_19, %c0_20], %32 {strides = array<i32>} : memref<1x16x8xf32, #tpu.memory_space<vmem>>, vector<1x16x8xf32>,
    return
  }
  func.func @transform_0(%arg0: i32, %arg1: i32) -> (i32, i32, i32) {
    %c0_i32 = arith.constant 0 : i32
    %c0_i32_0 = arith.constant 0 : i32
    return %arg0, %c0_i32, %arg1 : i32, i32, i32
  }
  func.func @transform_1(%arg0: i32, %arg1: i32) -> (i32, i32, i32) {
    %c0_i32 = arith.constant 0 : i32
    %c0_i32_0 = arith.constant 0 : i32
    return %arg0, %c0_i32, %arg1 : i32, i32, i32
  }
}

</mosaic_0001>

<llo_original>
// kernel: tpu_custom_call.1
$region0: #{tpu_custom_call.1}
  #allocation0 [shape = 'u32[]', space=smem, size = 0x4, offset = 0x4, fixed_abs, tag = 'smem constant byte address 0x4 - core index']
  #allocation1 [shape = 'u32[144,128]{1,0:T(1,128)}', space=vmem, size = 0x12000, scoped, tag = 'internal scratch']
  %s0 = inlined_call_operand.vmem [shape: f32[2,16,8], index: 0, kind: input, shape index: {}]
  %s1 = inlined_call_operand.vmem [shape: f32[2,16,8], index: 1, kind: output, shape index: {}]
  %s2 = sld [smem:[#allocation0]]
  $region37: #{tpu_custom_call.1} parent=0
    _
  %s4 = ssub.s32 1, %s2
  %s5 = scalar_select 0, %s4, %s2
  loop: start=0, step=1, limit=4
  $region2: #{tpu_custom_call.1} parent=0 // loop_pre_header
    _
  $region3: #{tpu_custom_call.1} parent=0 // loop_header
    %s7 = sphi 0, %s11
    %p8 = scmp.ge.s32.totalorder %s7, 4
    %s14 = sphi 0, %s26
    %s15 = sphi 0, %s22
    %s16 = sphi 0, %s14
    %s17 = sphi 0, %s15
    %s18 = sphi 0, %s16
    %s19 = sphi 0, %s17
    %s31 = sphi 0, %s33
    %s34 = sphi 0, %s31
    %s35 = sphi 0, %s34
    %s51 = sphi 0, %s35
    %s59 = sphi 0, %s61
    %s62 = sphi 0, %s59
    %s63 = sphi 0, %s62
    %s79 = sphi 0, %s63
  $region4: #{tpu_custom_call.1} parent=0 // loop_header_branch
    %10 = sbr.rel (%p8) target = $region8
  $region5: #{tpu_custom_call.1} parent=0 // loop_body
    %s12 = ssub.s32 %s7, 1
    %s13 = ssub.s32 %s7, 2
    %s20 = sadd.s32 1, %s15
    %p21 = scmp.ge.s32.totalorder %s20, 1
    %s22 = scalar_select %p21, 0, %s20
    %s23 = sadd.s32 1, %s14
    %s24 = scalar_select %p21, %s23, %s14
    %p25 = scmp.ge.s32.totalorder %s24, 2
    %s26 = scalar_select %p25, 0, %s24
    %s27 = ssub.s32 %s14, %s26
    %s28 = ssub.s32 %s15, %s22
    %s29 = sor.u32 %s27, %s28
    %p30 = scmp.eq.s32.totalorder %s29, 0
    %s32 = sadd.s32 %s31, 1
    %s33 = scalar_select %p30, %s31, %s32
    %p36 = pneg %p30
    %p37 = scmp.eq.s32.totalorder %s7, 1
    %p38 = por %p36, %p37
    %p39 = scmp.ne.s32.totalorder %s31, %s34
    %p40 = scmp.eq.s32.totalorder %s7, 0
    %p41 = por %p39, %p40
    %p42 = scmp.ne.s32.totalorder %s31, %s34
    %p43 = scmp.eq.s32.totalorder %s12, 1
    %p44 = por %p42, %p43
    %p45 = scmp.ne.s32.totalorder %s34, %s35
    %p46 = scmp.eq.s32.totalorder %s12, 0
    %p47 = por %p45, %p46
    %p48 = scmp.ne.s32.totalorder %s34, %s35
    %p49 = scmp.eq.s32.totalorder %s13, 1
    %p50 = por %p48, %p49
    %p52 = scmp.ne.s32.totalorder %s35, %s51
    %p53 = scmp.eq.s32.totalorder %s13, 0
    %p54 = por %p52, %p53
    %s55 = ssub.s32 %s14, %s26
    %s56 = ssub.s32 %s15, %s22
    %s57 = sor.u32 %s55, %s56
    %p58 = scmp.eq.s32.totalorder %s57, 0
    %s60 = sadd.s32 %s59, 1
    %s61 = scalar_select %p58, %s59, %s60
    %p64 = pneg %p58
    %p65 = scmp.eq.s32.totalorder %s7, 1
    %p66 = por %p64, %p65
    %p67 = scmp.ne.s32.totalorder %s59, %s62
    %p68 = scmp.eq.s32.totalorder %s7, 0
    %p69 = por %p67, %p68
    %p70 = scmp.ne.s32.totalorder %s59, %s62
    %p71 = scmp.eq.s32.totalorder %s12, 1
    %p72 = por %p70, %p71
    %p73 = scmp.ne.s32.totalorder %s62, %s63
    %p74 = scmp.eq.s32.totalorder %s12, 0
    %p75 = por %p73, %p74
    %p76 = scmp.ne.s32.totalorder %s62, %s63
    %p77 = scmp.eq.s32.totalorder %s13, 1
    %p78 = por %p76, %p77
    %p80 = scmp.ne.s32.totalorder %s63, %s79
    %p81 = scmp.eq.s32.totalorder %s13, 0
    %p82 = por %p80, %p81
    %p83 = scmp.le.s32.totalorder 1, %s7
    %p84 = scmp.lt.s32.totalorder %s7, 3
    %p85 = pnand %p83, %p84
    %p86 = pneg %p85
    // Predicated region
    $region9: #{tpu_custom_call.1} parent=5 // pred_check
      _
    $region10: #{tpu_custom_call.1} parent=5 // pred_check_branch
      %88 = sbr.rel (%p85) target = $region12
    $region11: #{tpu_custom_call.1} parent=5 // pred_region
      %s89 = ssub.s32 %s7, 1
    $region12: #{tpu_custom_call.1} parent=5 // pred_fallthru
      _
    %p90 = scmp.lt.s32.totalorder %s7, 2
    // Predicated region
    $region13: #{tpu_custom_call.1} parent=5 // pred_check
      %p91 = pneg %p90
    $region14: #{tpu_custom_call.1} parent=5 // pred_check_branch
      %93 = sbr.rel (%p91) target = $region16
    $region15: #{tpu_custom_call.1} parent=5 // pred_region
      // Predicated region
      $region17: #{tpu_custom_call.1} parent=15 // pred_check
        %p94 = pneg %p41
      $region18: #{tpu_custom_call.1} parent=15 // pred_check_branch
        %96 = sbr.rel (%p94) target = $region20
      $region19: #{tpu_custom_call.1} parent=15 // pred_region
        %p97 = scmp.lt.s32.totalorder %s14, 1
        %s98 = scalar_select %p97, %s14, 1
        %p99 = scmp.lt.s32.totalorder %s15, 0
        %s100 = scalar_select %p99, %s15, 0
        %s101 = smul.addr %s98, 2
        %s102 = sadd.s32 %s100, %s101
        %s103 = smul.addr %s102, 8
        %s104 = scalar_lea.vmem %s0, %s103
      $region20: #{tpu_custom_call.1} parent=15 // pred_fallthru
        _
    $region16: #{tpu_custom_call.1} parent=5 // pred_fallthru
      _
    %p105 = scmp.le.s32.totalorder 1, %s7
    %p106 = scmp.lt.s32.totalorder %s7, 3
    %p107 = pnand %p105, %p106
    %p108 = pneg %p107
    // Predicated region
    $region21: #{tpu_custom_call.1} parent=5 // pred_check
      _
    $region22: #{tpu_custom_call.1} parent=5 // pred_check_branch
      %110 = sbr.rel (%p107) target = $region24
    $region23: #{tpu_custom_call.1} parent=5 // pred_region
      %s111 = ssub.s32 %s7, 1
      %p112 = scmp.lt.s32.totalorder %s16, 1
      %s113 = scalar_select %p112, %s16, 1
      %p114 = scmp.lt.s32.totalorder %s17, 0
      %s115 = scalar_select %p114, %s17, 0
      %s116 = smul.addr %s113, 2
      %s117 = sadd.s32 %s115, %s116
      %s118 = smul.addr %s117, 8
      %s119 = scalar_lea.vmem %s0, %s118
      %p120 = pneg %p47
      %p121 = pneg %p44
      %p122 = pneg %p75
      %p123 = pneg %p72
      %p124 = scmp.lt.s32.totalorder %s16, 1
      %s125 = scalar_select %p124, %s16, 1
      %p126 = scmp.lt.s32.totalorder %s17, 0
      %s127 = scalar_select %p126, %s17, 0
      %s128 = smul.addr %s125, 2
      %s129 = sadd.s32 %s127, %s128
      %s130 = smul.addr %s129, 8
      %s131 = scalar_lea.vmem %s1, %s130
      %p132 = scmp.lt.s32.totalorder %s16, 1
      %s133 = scalar_select %p132, %s16, 1
      %p134 = scmp.lt.s32.totalorder %s17, 0
      %s135 = scalar_select %p134, %s17, 0
      %s136 = smul.addr %s133, 2
      %s137 = sadd.s32 %s135, %s136
      %s138 = smul.addr %s137, 8
      %s139 = scalar_lea.vmem %s0, %s138
      %p140 = scmp.lt.s32.totalorder %s16, 1
      %s141 = scalar_select %p140, %s16, 1
      %p142 = scmp.lt.s32.totalorder %s17, 0
      %s143 = scalar_select %p142, %s17, 0
      %s144 = smul.addr %s141, 2
      %s145 = sadd.s32 %s143, %s144
      %s146 = smul.addr %s145, 8
      %s147 = scalar_lea.vmem %s1, %s146
      %v148 = vld [vmem:[%s139] sm:$0x1]
      %v149 = vld [vmem:[%s139 + $0xf] sm:$0x1]
      %v150 = vlaneseq
      %v151 = vshrl.u32 %v150, 7
      %v152 = vsub.s32 0, %v151
      %v153 = vrot.slane %v148, %v152
      %v154 = vld [vmem:[%s139] sm:$0xff]
      %v155 = vld [vmem:[%s139 + $0x8] sm:$0x3f]
      %vm158 = vcmask 1041408
      %v159 = vrot.slane %v154, 6
      %v160 = vrot.slane %v155, 6
      %v161 = vsel %vm158, %v159, %v160
      %v164 = vsel %vm158, %v153, %v159
      %v165 = vadd.f32 %v164, 0.0
      %v166 = vadd.f32 %v161, 0.0
      %v167 = vld [vmem:[%s139 + $0x8] sm:$0x7f]
      %vm169 = vcmask 1040384
      %v170 = vrot.slane %v154, 7
      %v171 = vrot.slane %v167, 7
      %v172 = vsel %vm169, %v170, %v171
      %v175 = vsel %vm169, %v148, %v170
      %v176 = vadd.f32 %v165, %v175
      %v177 = vadd.f32 %v166, %v172
      %v178 = vld [vmem:[%s139 + $0x8] sm:$0xff]
      %v179 = vadd.f32 %v176, %v154
      %v180 = vadd.f32 %v177, %v178
      %v181 = vld [vmem:[%s139 + $0x1] sm:$0xff]
      %v182 = vld [vmem:[%s139 + $0x9] sm:$0x7f]
      %v184 = vrot.slane %v149, 1
      %vm186 = vcmask 1046528
      %v187 = vsel %vm186, %v182, %v184
      %v188 = vadd.f32 %v179, %v181
      %v189 = vadd.f32 %v180, %v187
      %v190 = vld [vmem:[%s139 + $0x2] sm:$0xff]
      %v191 = vld [vmem:[%s139 + $0xa] sm:$0x3f]
      %v192 = vlaneseq
      %v193 = vshrl.u32 %v192, 7
      %v194 = vsub.s32 0, %v193
      %v195 = vrot.slane %v149, %v194
      %vm196 = vcmask 1045504
      %v197 = vsel %vm196, %v191, %v195
      %v198 = vadd.f32 %v188, %v190
      %v199 = vadd.f32 %v189, %v197
      %v200 = vmul.f32 %v198, 0.2
      %v201 = vmul.f32 %v199, 0.2
      %vm202 = vcmask 64512
      %203 = vst.msk [vmem:[%s147] sm:$0xff] %vm202, %v200
      %204 = vst.msk [vmem:[%s147 + $0x8] sm:$0xff] %vm202, %v201
      %p205 = scmp.lt.s32.totalorder %s16, 1
      %s206 = scalar_select %p205, %s16, 1
      %p207 = scmp.lt.s32.totalorder %s17, 0
      %s208 = scalar_select %p207, %s17, 0
      %s209 = smul.addr %s206, 2
      %s210 = sadd.s32 %s208, %s209
      %s211 = smul.addr %s210, 8
      %s212 = scalar_lea.vmem %s1, %s211
      // Predicated region
      $region25: #{tpu_custom_call.1} parent=23 // pred_check
        %p213 = pneg %p72
      $region26: #{tpu_custom_call.1} parent=23 // pred_check_branch
        %215 = sbr.rel (%p213) target = $region28
      $region27: #{tpu_custom_call.1} parent=23 // pred_region
        _
      $region28: #{tpu_custom_call.1} parent=23 // pred_fallthru
        _
    $region24: #{tpu_custom_call.1} parent=5 // pred_fallthru
      _
    %p216 = scmp.le.s32.totalorder 2, %s7
    // Predicated region
    $region29: #{tpu_custom_call.1} parent=5 // pred_check
      %p217 = pneg %p216
    $region30: #{tpu_custom_call.1} parent=5 // pred_check_branch
      %219 = sbr.rel (%p217) target = $region32
    $region31: #{tpu_custom_call.1} parent=5 // pred_region
      %s220 = ssub.s32 %s7, 2
      // Predicated region
      $region33: #{tpu_custom_call.1} parent=31 // pred_check
        %p221 = pneg %p78
      $region34: #{tpu_custom_call.1} parent=31 // pred_check_branch
        %223 = sbr.rel (%p221) target = $region36
      $region35: #{tpu_custom_call.1} parent=31 // pred_region
        %p224 = scmp.lt.s32.totalorder %s18, 1
        %s225 = scalar_select %p224, %s18, 1
        %p226 = scmp.lt.s32.totalorder %s19, 0
        %s227 = scalar_select %p226, %s19, 0
        %s228 = smul.addr %s225, 2
        %s229 = sadd.s32 %s227, %s228
        %s230 = smul.addr %s229, 8
        %s231 = scalar_lea.vmem %s1, %s230
      $region36: #{tpu_custom_call.1} parent=31 // pred_fallthru
        _
    $region32: #{tpu_custom_call.1} parent=5 // pred_fallthru
      _
  $region6: #{tpu_custom_call.1} parent=0 // loop_footer
    %s11 = sadd.s32 1, %s7
  $region7: #{tpu_custom_call.1} parent=0 // loop_footer_branch
    %6 = sbr.rel target = $region3
  $region8: #{tpu_custom_call.1} parent=0 // loop_exit
    _

</llo_original>
